<compile_context>
chip_gen: v6e
topology: v6e:2x2x1
jax: 0.10.0
libtpu: 0.0.40
codegen_flags: <defaults>
</compile_context>

<pallas_src>
from functools import partial

import jax
import jax.numpy as jnp
from jax.experimental import pallas as pl
from jax.experimental.pallas import tpu as pltpu

NEG_SLOPE = 0.2          # LeakyReLU negative slope (module default)
_NEG_INF = -1e30


# --------------------------------------------------------------------------- #
# VMEM budgeting
# --------------------------------------------------------------------------- #
def _vmem_limit_bytes():
    """Per-generation VMEM limit handed to the compiler AND used for tile planning."""
    cap = 64 * 1024 * 1024                                   # safe fallback (v7x per-TC)
    try:
        info = pltpu.get_tpu_info()
        cap = int(getattr(info, "vmem_capacity_bytes", None) or cap)
    except Exception:
        pass
    # ~60% of physical leaves headroom for compiler-internal scratch / semaphores.
    return max(int(cap * 0.6), 32 * 1024 * 1024)


def _pick_block_rows(n_dst, per_row_bytes, fixed_bytes, budget_bytes, max_rows=512):
    """Largest dst-row tile that fits; 0 if even a minimal tile does not fit.

    Keeps at least 2 dst tiles so the 'parallel' dst axis can feed both v7x TensorCores
    (and gives the pipeline something to overlap on 1-TC chips).
    """
    avail = budget_bytes - fixed_bytes
    if avail <= 0:
        return 0
    rows = int(avail // max(1, per_row_bytes))
    if rows < 8:
        return 0
    rows = min(rows, max_rows, max(8, -(-n_dst // 2)))       # >= 2 dst tiles when possible
    if rows >= n_dst:
        return n_dst
    rows = (rows // 32) * 32 if rows >= 32 else (rows // 8) * 8   # int8 adj packs 32 subl.
    return max(8, min(rows, n_dst))


# --------------------------------------------------------------------------- #
# Prologue: src projection (gridded over src rows, fused [W_src | v_src] RHS).
# --------------------------------------------------------------------------- #
def _src_project_kernel(feat_src_ref, w_fused_ref, hs_ref, e_src_ref, *, hf):
    proj = jnp.dot(feat_src_ref[...], w_fused_ref[...],
                   preferred_element_type=jnp.float32)       # (Ts, H*F + H)
    hs_ref[...] = proj[:, :hf].astype(jnp.bfloat16)          # (Ts, H*F)  bf16
    e_src_ref[...] = proj[:, hf:]                            # (Ts, H)    f32


# --------------------------------------------------------------------------- #
# Path A: dst-tiled kernel with VMEM-resident hs / e_src^T (single softmax pass).
# --------------------------------------------------------------------------- #
def _microconv_resident_kernel(e_dst_ref, adj_ref, hs_ref, e_src_t_ref, out_ref, *,
                               num_heads, out_feats, bf16_exp):
    H, F = num_heads, out_feats

    mask = adj_ref[...] != 0                                 # (Td, N_src) -- hoisted
    deg_ok = (jnp.sum(mask.astype(jnp.float32), axis=-1, keepdims=True) > 0.0)
    deg_ok = deg_ok.astype(jnp.float32)                      # (Td, 1) zero-in-degree mask
    e_dst = e_dst_ref[...]                                   # (Td, H)
    e_src_t = e_src_t_ref[...]                               # (H, N_src)
    hs = hs_ref[...]                                         # (N_src, H*F) bf16

    outs = []
    for h in range(H):                                       # small static H (unrolled)
        logits = e_dst[:, h:h + 1] + e_src_t[h:h + 1, :]     # (Td, N_src) broadcast add
        z = jnp.maximum(logits, NEG_SLOPE * logits)          # LeakyReLU: mul+max
        z = jnp.where(mask, z, _NEG_INF)                     # single mask select
        m = jnp.max(z, axis=-1, keepdims=True)               # (Td, 1)
        zc = z - m
        if bf16_exp:                                         # v6e/v7x packed-EUP lever
            p = jnp.exp(zc.astype(jnp.bfloat16))
            denom = jnp.sum(p.astype(jnp.float32), axis=-1, keepdims=True)
        else:
            pf = jnp.exp(zc)                                 # masked entries underflow -> 0
            denom = jnp.sum(pf, axis=-1, keepdims=True)
            p = pf.astype(jnp.bfloat16)
        msg = jnp.dot(p, hs[:, h * F:(h + 1) * F],
                      preferred_element_type=jnp.float32)    # (Td, F) bf16 x bf16 -> f32
        inv = pl.reciprocal(denom, approx=True) * deg_ok     # EUP; isolated rows -> 0
        outs.append(msg * inv)

    # TODO(synk): real configs should have H*F >= 128 so this store is lane-dense.
    out_ref[...] = jnp.maximum(jnp.concatenate(outs, axis=-1), 0.0)


# --------------------------------------------------------------------------- #
# Path B: src-tiled kernel with online (flash-style) softmax for large N_src.
# --------------------------------------------------------------------------- #
def _microconv_flash_kernel(e_dst_ref, adj_ref, hs_ref, e_src_t_ref, out_ref,
                            m_sc, l_sc, acc_sc, deg_sc, *,
                            num_heads, out_feats, bf16_exp):
    H, F = num_heads, out_feats
    j = pl.program_id(1)

    @pl.when(j == 0)
    def _():
        m_sc[...] = jnp.full_like(m_sc, _NEG_INF)
        l_sc[...] = jnp.zeros_like(l_sc)
        acc_sc[...] = jnp.zeros_like(acc_sc)
        deg_sc[...] = jnp.zeros_like(deg_sc)

    mask = adj_ref[...] != 0                                 # (Td, Ts)
    deg_sc[...] += jnp.sum(mask.astype(jnp.float32), axis=-1, keepdims=True)
    e_dst = e_dst_ref[...]                                   # (Td, H)
    e_src_t = e_src_t_ref[...]                               # (H, Ts)
    hs = hs_ref[...]                                         # (Ts, H*F) bf16

    for h in range(H):
        logits = e_dst[:, h:h + 1] + e_src_t[h:h + 1, :]     # (Td, Ts)
        z = jnp.maximum(logits, NEG_SLOPE * logits)          # LeakyReLU
        z = jnp.where(mask, z, _NEG_INF)
        m_old = m_sc[:, h:h + 1]
        m_new = jnp.maximum(m_old, jnp.max(z, axis=-1, keepdims=True))
        alpha = jnp.exp(m_old - m_new)                       # (Td, 1) rescale factor
        zc = z - m_new
        if bf16_exp:
            p = jnp.exp(zc.astype(jnp.bfloat16))
            psum = jnp.sum(p.astype(jnp.float32), axis=-1, keepdims=True)
        else:
            pf = jnp.exp(zc)                                 # masked entries underflow -> 0
            psum = jnp.sum(pf, axis=-1, keepdims=True)
            p = pf.astype(jnp.bfloat16)
        l_sc[:, h:h + 1] = alpha * l_sc[:, h:h + 1] + psum
        acc_sc[:, h * F:(h + 1) * F] = (
            alpha * acc_sc[:, h * F:(h + 1) * F]
            + jnp.dot(p, hs[:, h * F:(h + 1) * F], preferred_element_type=jnp.float32))
        m_sc[:, h:h + 1] = m_new

    @pl.when(j == pl.num_programs(1) - 1)
    def _():
        deg_ok = (deg_sc[...] > 0.0).astype(jnp.float32)     # (Td, 1)
        outs = []
        for h in range(H):
            inv = pl.reciprocal(jnp.maximum(l_sc[:, h:h + 1], 1e-30), approx=True) * deg_ok
            outs.append(acc_sc[:, h * F:(h + 1) * F] * inv)
        out_ref[...] = jnp.maximum(jnp.concatenate(outs, axis=-1), 0.0)


# --------------------------------------------------------------------------- #
# Wrapper
# --------------------------------------------------------------------------- #
def micro_conv(feat_src, feat_dst, w_src, w_dst, attn, adj, *,
               num_heads, out_feats, block_rows=None, block_src=None, bf16_exp=False):
    """MicroConv forward.  Returns (N_dst, num_heads * out_feats) f32.

    adj[v, u] != 0 <=> edge u (src) -> v (dst).  Passing `block_src` forces the
    src-tiled (online-softmax) path; otherwise it is chosen automatically when the
    resident path would not fit the per-generation VMEM budget.
    """
    n_src, d_src = feat_src.shape
    n_dst, d_dst = feat_dst.shape
    H, F = num_heads, out_feats
    hf = H * F

    feat_src = feat_src.astype(jnp.float32)
    feat_dst = feat_dst.astype(jnp.float32)
    w_src = w_src.astype(jnp.float32)
    w_dst = w_dst.astype(jnp.float32)
    attn = attn.astype(jnp.float32)
    adj_i8 = (adj != 0).astype(jnp.int8)                     # structure only, no truncation

    # Host-side weight folding (tiny): v_*[:, h] = W_*[:, hF:(h+1)F] @ attn_part[h].
    a_dst = attn[:, :F]                                      # (H, F)
    a_src = attn[:, F:]                                      # (H, F)
    v_dst = jnp.einsum('dhf,hf->dh', w_dst.reshape(d_dst, H, F), a_dst)   # (D_dst, H)
    v_src = jnp.einsum('dhf,hf->dh', w_src.reshape(d_src, H, F), a_src)   # (D_src, H)

    # dst attention logits: tiny (N_dst, H) matmul done by XLA (no per-tile feat_dst DMA).
    e_dst = jnp.dot(feat_dst, v_dst)                         # (N_dst, H) f32

    # Prologue (gridded over src rows): hs (bf16) + e_src in one pass, fused RHS.
    w_fused = jnp.concatenate([w_src, v_src], axis=1)        # (D_src, H*F + H)
    ts_p = n_src if n_src <= 512 else 512
    vmem = pl.BlockSpec(memory_space=pltpu.MemorySpace.VMEM)
    hs, e_src = pl.pallas_call(
        partial(_src_project_kernel, hf=hf),
        out_shape=(jax.ShapeDtypeStruct((n_src, hf), jnp.bfloat16),
                   jax.ShapeDtypeStruct((n_src, H), jnp.float32)),
        grid_spec=pltpu.PrefetchScalarGridSpec(
            num_scalar_prefetch=0,
            grid=(pl.cdiv(n_src, ts_p),),
            in_specs=[pl.BlockSpec((ts_p, d_src), lambda i: (i, 0)),
                      vmem],                                 # fused weights: VMEM-resident
            out_specs=(pl.BlockSpec((ts_p, hf), lambda i: (i, 0)),
                       pl.BlockSpec((ts_p, H), lambda i: (i, 0))),
        ),
        compiler_params=pltpu.CompilerParams(dimension_semantics=("parallel",)),
    )(feat_src, w_fused)
    e_src_t = e_src.T                                        # (H, N_src), one-time

    vmem_limit = _vmem_limit_bytes()
    budget = vmem_limit - 2 * 1024 * 1024                    # compiler-internal margin

    use_flash = block_src is not None
    td = 0
    if not use_flash:
        # Path A sizing: residents (single copy) + double-buffered e_dst/adj/out blocks
        # + ~16 B/src of live (Td, N_src) in-kernel temporaries per dst row.
        resident = n_src * hf * 2 + H * n_src * 4
        per_row = 2 * (4 * H + n_src + 4 * hf) + 16 * n_src
        td = block_rows or _pick_block_rows(n_dst, per_row, resident, budget)
        use_flash = td == 0                                  # does not fit -> flash path

    kernel_kwargs = dict(num_heads=H, out_feats=F, bf16_exp=bf16_exp)

    if not use_flash:
        grid = (pl.cdiv(n_dst, td),)
        return pl.pallas_call(
            partial(_microconv_resident_kernel, **kernel_kwargs),
            out_shape=jax.ShapeDtypeStruct((n_dst, hf), jnp.float32),
            grid_spec=pltpu.PrefetchScalarGridSpec(
                num_scalar_prefetch=0,
                grid=grid,
                in_specs=[
                    pl.BlockSpec((td, H), lambda i: (i, 0)),       # e_dst row tile
                    pl.BlockSpec((td, n_src), lambda i: (i, 0)),   # adj row tile (int8)
                    vmem,                                          # hs (bf16): resident
                    vmem,                                          # e_src^T  : resident
                ],
                out_specs=pl.BlockSpec((td, hf), lambda i: (i, 0)),
            ),
            compiler_params=pltpu.CompilerParams(
                dimension_semantics=("parallel",),
                vmem_limit_bytes=vmem_limit,
            ),
        )(e_dst, adj_i8, hs, e_src_t)

    # ---- Path B: src-tiled online softmax (flash-style) -------------------- #
    ts = block_src if block_src is not None else (n_src if n_src <= 512 else 512)
    if ts < n_src:
        ts = max(128, (ts // 128) * 128)                     # lane-aligned src tiles
    ts = min(ts, n_src)
    pad = (-n_src) % ts
    if pad:                                                  # padded columns = non-edges
        adj_i8 = jnp.pad(adj_i8, ((0, 0), (0, pad)))
        hs = jnp.pad(hs, ((0, pad), (0, 0)))
        e_src_t = jnp.pad(e_src_t, ((0, 0), (0, pad)))
    n_src_p = n_src + pad

    if block_rows:
        td = block_rows
    else:
        fixed = 2 * (ts * hf * 2 + H * ts * 4)               # double-buffered hs / e_src^T
        per_row = 2 * (4 * H + ts + 4 * hf) + 4 * (2 * H + hf + 1) + 16 * ts
        td = max(_pick_block_rows(n_dst, per_row, fixed, budget), 8)

    grid = (pl.cdiv(n_dst, td), n_src_p // ts)
    return pl.pallas_call(
        partial(_microconv_flash_kernel, **kernel_kwargs),
        out_shape=jax.ShapeDtypeStruct((n_dst, hf), jnp.float32),
        grid_spec=pltpu.PrefetchScalarGridSpec(
            num_scalar_prefetch=0,
            grid=grid,
            in_specs=[
                pl.BlockSpec((td, H), lambda i, j: (i, 0)),        # e_dst row tile
                pl.BlockSpec((td, ts), lambda i, j: (i, j)),       # adj tile (int8)
                pl.BlockSpec((ts, hf), lambda i, j: (j, 0)),       # hs src tile (bf16)
                pl.BlockSpec((H, ts), lambda i, j: (0, j)),        # e_src^T src tile
            ],
            out_specs=pl.BlockSpec((td, hf), lambda i, j: (i, 0)),
            scratch_shapes=[
                pltpu.VMEM((td, H), jnp.float32),                  # running max
                pltpu.VMEM((td, H), jnp.float32),                  # running denom
                pltpu.VMEM((td, hf), jnp.float32),                 # running accumulator
                pltpu.VMEM((td, 1), jnp.float32),                  # running in-degree
            ],
        ),
        compiler_params=pltpu.CompilerParams(
            dimension_semantics=("parallel", "arbitrary"),
            vmem_limit_bytes=vmem_limit,
        ),
    )(e_dst, adj_i8, hs, e_src_t)


# --------------------------------------------------------------------------- #
# Pure-JAX reference (mirrors the PyTorch/DGL forward with dense adjacency)
# --------------------------------------------------------------------------- #
def reference(feat_src, feat_dst, w_src, w_dst, attn, adj, num_heads, out_feats):
    H, F = num_heads, out_feats
    hs = (feat_src @ w_src).reshape(-1, H, F)
    hd = (feat_dst @ w_dst).reshape(-1, H, F)
    e_dst = (hd * attn[:, :F]).sum(-1)                       # (N_dst, H)
    e_src = (hs * attn[:, F:]).sum(-1)                       # (N_src, H)
    logits = e_dst[:, None, :] + e_src[None, :, :]           # (N_dst, N_src, H)
    z = jnp.where(logits >= 0, logits, NEG_SLOPE * logits)
    mask = (adj != 0)[:, :, None]
    z = jnp.where(mask, z, _NEG_INF)
    m = jnp.max(z, axis=1, keepdims=True)
    p = jnp.where(mask, jnp.exp(z - m), 0.0)
    denom = p.sum(axis=1, keepdims=True)
    alpha = p / jnp.where(denom > 0, denom, 1.0)
    out = jnp.einsum('dsh,shf->dhf', alpha, hs).reshape(-1, H * F)
    return jnp.maximum(out, 0.0)


if __name__ == "__main__":
    # Shapes chosen so the resident path runs with 2 dst tiles (pipelining + both v7x TCs)
    # and a second forced run exercises the src-tiled online-softmax path with 2 src tiles.
    N_SRC, N_DST = 256, 128
    D_SRC, D_DST = 64, 32
    H, F = 4, 16                     # num_heads, out_feats  (H*F = 64)

    key = jax.random.PRNGKey(0)
    k1, k2, k3, k4, k5, k6 = jax.random.split(key, 6)

    feat_src = jax.random.normal(k1, (N_SRC, D_SRC), jnp.float32)
    feat_dst = jax.random.normal(k2, (N_DST, D_DST), jnp.float32)
    w_src = jax.random.normal(k3, (D_SRC, H * F), jnp.float32) * 0.1
    w_dst = jax.random.normal(k4, (D_DST, H * F), jnp.float32) * 0.1
    attn = jax.random.normal(k5, (H, 2 * F), jnp.float32) * 0.1
    adj = jax.random.bernoulli(k6, 0.3, (N_DST, N_SRC)).astype(jnp.float32)
    adj = adj.at[5, :].set(0.0)      # isolated dst node (no incoming edges) -> output 0

    ref = reference(feat_src, feat_dst, w_src, w_dst, attn, adj, H, F)

    # Path A: VMEM-resident hs / e_src^T, auto-planned dst tiles.
    out_a = micro_conv(feat_src, feat_dst, w_src, w_dst, attn, adj,
                       num_heads=H, out_feats=F)
    out_a = jax.block_until_ready(out_a)
    assert out_a.shape == (N_DST, H * F)
    # Tolerance covers bf16 hs / bf16 probabilities and the approx-reciprocal (EUP) path.
    assert jnp.allclose(out_a, ref, rtol=2e-2, atol=2e-2), "resident path mismatch"

    # Path B: forced src tiling -> flash-style online softmax (large-N_src / v7x path).
    out_b = micro_conv(feat_src, feat_dst, w_src, w_dst, attn, adj,
                       num_heads=H, out_feats=F, block_rows=32, block_src=128)
    out_b = jax.block_until_ready(out_b)
    assert jnp.allclose(out_b, ref, rtol=2e-2, atol=2e-2), "flash path mismatch"

    print("KERNEL_OK")
</pallas_src>

<mosaic_0001>
module attributes {stable_mosaic.version = 11 : i64} {
  func.func @_src_project_kernel(%arg0: i32, %arg1: memref<256x64xf32, #tpu.memory_space<vmem>>, %arg2: memref<64x68xf32, #tpu.memory_space<vmem>>, %arg3: memref<256x64xbf16, #tpu.memory_space<vmem>>, %arg4: memref<256x4xf32, #tpu.memory_space<vmem>>) attributes {dimension_semantics = [#tpu.dimension_semantics<parallel>], iteration_bounds = array<i64: 1>, scalar_prefetch = 0 : i64, scratch_operands = 0 : i64, tpu.core_type = #tpu.core_type<tc>, window_params = [{transform_indices = @transform_0, window_bounds = array<i64: 256, 64>}, {pipeline_mode = #tpu.pipeline_mode<synchronous>, transform_indices = @transform_1, window_bounds = array<i64: 64, 68>}, {transform_indices = @transform_2, window_bounds = array<i64: 256, 64>}, {transform_indices = @transform_3, window_bounds = array<i64: 256, 4>}]} {
    %c0 = arith.constant 0 : index
    %c0_0 = arith.constant 0 : index
    %0 = vector.load %arg1[%c0, %c0_0] : memref<256x64xf32, #tpu.memory_space<vmem>>, vector<256x64xf32>
    %c0_1 = arith.constant 0 : index
    %c0_2 = arith.constant 0 : index
    %1 = vector.load %arg2[%c0_1, %c0_2] : memref<64x68xf32, #tpu.memory_space<vmem>>, vector<64x68xf32>
    %cst = arith.constant dense<0.000000e+00> : vector<256x68xf32>
    %2 = tpu.matmul %0, %1, %cst {dimension_numbers = #tpu.dot_dimension_numbers<[1], [0], [0], [1], [0, 0, 1, 1], [], []>} : vector<256x64xf32>, vector<64x68xf32>, vector<256x68xf32> -> vector<256x68xf32>
    %3 = vector.extract_strided_slice %2 {offsets = [0, 0], sizes = [256, 64], strides = [1, 1]} : vector<256x68xf32> to vector<256x64xf32>
    %4 = arith.truncf %3 : vector<256x64xf32> to vector<256x64xbf16>
    %c0_3 = arith.constant 0 : index
    %c0_4 = arith.constant 0 : index
    %5 = vector.load %arg3[%c0_3, %c0_4] : memref<256x64xbf16, #tpu.memory_space<vmem>>, vector<256x64xbf16>
    tpu.vector_store %arg3[%c0_3, %c0_4], %4 {strides = array<i32>} : memref<256x64xbf16, #tpu.memory_space<vmem>>, vector<256x64xbf16>,
    %6 = vector.extract_strided_slice %2 {offsets = [0, 64], sizes = [256, 4], strides = [1, 1]} : vector<256x68xf32> to vector<256x4xf32>
    %c0_5 = arith.constant 0 : index
    %c0_6 = arith.constant 0 : index
    %7 = vector.load %arg4[%c0_5, %c0_6] : memref<256x4xf32, #tpu.memory_space<vmem>>, vector<256x4xf32>
    tpu.vector_store %arg4[%c0_5, %c0_6], %6 {strides = array<i32>} : memref<256x4xf32, #tpu.memory_space<vmem>>, vector<256x4xf32>,
    return
  }
  func.func @transform_0(%arg0: i32) -> (i32, i32) {
    %c0_i32 = arith.constant 0 : i32
    %c0_i32_0 = arith.constant 0 : i32
    return %arg0, %c0_i32 : i32, i32
  }
  func.func @transform_1(%arg0: i32) -> (i32, i32) {
    %c0_i32 = arith.constant 0 : i32
    %c0_i32_0 = arith.constant 0 : i32
    %c0_i32_1 = arith.constant 0 : i32
    return %c0_i32, %c0_i32_0 : i32, i32
  }
  func.func @transform_2(%arg0: i32) -> (i32, i32) {
    %c0_i32 = arith.constant 0 : i32
    %c0_i32_0 = arith.constant 0 : i32
    return %arg0, %c0_i32 : i32, i32
  }
  func.func @transform_3(%arg0: i32) -> (i32, i32) {
    %c0_i32 = arith.constant 0 : i32
    %c0_i32_0 = arith.constant 0 : i32
    return %arg0, %c0_i32 : i32, i32
  }
}

</mosaic_0001>

<llo_original>
// kernel: tpu_custom_call.1
$region0: #{tpu_custom_call.1}
  #allocation0 [shape = 'u32[]', space=smem, size = 0x4, offset = 0x4, fixed_abs, tag = 'smem constant byte address 0x4 - core index']
  #allocation1 [shape = 'u32[144,128]{1,0:T(1,128)}', space=vmem, size = 0x12000, scoped, tag = 'internal scratch']
  %s0 = inlined_call_operand.vmem [shape: f32[256,64], index: 0, kind: input, shape index: {}]
  %s1 = inlined_call_operand.vmem [shape: f32[64,68], index: 1, kind: input, shape index: {}]
  %s2 = inlined_call_operand.vmem [shape: bf16[256,64], index: 2, kind: output, shape index: {0}]
  %s3 = inlined_call_operand.vmem [shape: f32[256,4], index: 3, kind: output, shape index: {1}]
  %4 = xla_tuple %s2, %s3
  %s5 = sld [smem:[#allocation0]]
  $region26: #{tpu_custom_call.1} parent=0
    _
  %s7 = ssub.s32 1, %s5
  %s8 = scalar_select 0, %s7, %s5
  // Predicated region
  $region2: #{tpu_custom_call.1} parent=0 // pred_check
    _
  $region3: #{tpu_custom_call.1} parent=0 // pred_check_branch
    %10 = sbr.rel (0) target = $region5
  $region4: #{tpu_custom_call.1} parent=0 // pred_region
    _
  $region5: #{tpu_custom_call.1} parent=0 // pred_fallthru
    _
  // Predicated region
  $region6: #{tpu_custom_call.1} parent=0 // pred_check
    _
  $region7: #{tpu_custom_call.1} parent=0 // pred_check_branch
    %12 = sbr.rel (0) target = $region9
  $region8: #{tpu_custom_call.1} parent=0 // pred_region
    _
  $region9: #{tpu_custom_call.1} parent=0 // pred_fallthru
    _
  %v13 = vld [vmem:[%s0] sm:$0xff]
  %v14 = vld [vmem:[%s0 + $0x8] sm:$0xff]
  %v15 = vld [vmem:[%s0 + $0x10] sm:$0xff]
  %v16 = vld [vmem:[%s0 + $0x18] sm:$0xff]
  %v17 = vld [vmem:[%s0 + $0x20] sm:$0xff]
  %v18 = vld [vmem:[%s0 + $0x28] sm:$0xff]
  %v19 = vld [vmem:[%s0 + $0x30] sm:$0xff]
  %v20 = vld [vmem:[%s0 + $0x38] sm:$0xff]
  %v21 = vld [vmem:[%s0 + $0x40] sm:$0xff]
  %v22 = vld [vmem:[%s0 + $0x48] sm:$0xff]
  %v23 = vld [vmem:[%s0 + $0x50] sm:$0xff]
  %v24 = vld [vmem:[%s0 + $0x58] sm:$0xff]
  %v25 = vld [vmem:[%s0 + $0x60] sm:$0xff]
  %v26 = vld [vmem:[%s0 + $0x68] sm:$0xff]
  %v27 = vld [vmem:[%s0 + $0x70] sm:$0xff]
  %v28 = vld [vmem:[%s0 + $0x78] sm:$0xff]
  %v29 = vld [vmem:[%s0 + $0x80] sm:$0xff]
  %v30 = vld [vmem:[%s0 + $0x88] sm:$0xff]
  %v31 = vld [vmem:[%s0 + $0x90] sm:$0xff]
  %v32 = vld [vmem:[%s0 + $0x98] sm:$0xff]
  %v33 = vld [vmem:[%s0 + $0xa0] sm:$0xff]
  %v34 = vld [vmem:[%s0 + $0xa8] sm:$0xff]
  %v35 = vld [vmem:[%s0 + $0xb0] sm:$0xff]
  %v36 = vld [vmem:[%s0 + $0xb8] sm:$0xff]
  %v37 = vld [vmem:[%s0 + $0xc0] sm:$0xff]
  %v38 = vld [vmem:[%s0 + $0xc8] sm:$0xff]
  %v39 = vld [vmem:[%s0 + $0xd0] sm:$0xff]
  %v40 = vld [vmem:[%s0 + $0xd8] sm:$0xff]
  %v41 = vld [vmem:[%s0 + $0xe0] sm:$0xff]
  %v42 = vld [vmem:[%s0 + $0xe8] sm:$0xff]
  %v43 = vld [vmem:[%s0 + $0xf0] sm:$0xff]
  %v44 = vld [vmem:[%s0 + $0xf8] sm:$0xff]
  %v45 = vld [vmem:[%s1] sm:$0xff]
  %v46 = vld [vmem:[%s1 + $0x8] sm:$0xff]
  %v47 = vld [vmem:[%s1 + $0x10] sm:$0xff]
  %v48 = vld [vmem:[%s1 + $0x18] sm:$0xff]
  %v49 = vld [vmem:[%s1 + $0x20] sm:$0xff]
  %v50 = vld [vmem:[%s1 + $0x28] sm:$0xff]
  %v51 = vld [vmem:[%s1 + $0x30] sm:$0xff]
  %v52 = vld [vmem:[%s1 + $0x38] sm:$0xff]
  %vm53 = vcmask 523264
  %v55 = vsel %vm53, %v13, 0
  %v58 = vsel %vm53, %v14, 0
  %v61 = vsel %vm53, %v15, 0
  %v64 = vsel %vm53, %v16, 0
  %v67 = vsel %vm53, %v17, 0
  %v70 = vsel %vm53, %v18, 0
  %v73 = vsel %vm53, %v19, 0
  %v76 = vsel %vm53, %v20, 0
  %v79 = vsel %vm53, %v21, 0
  %v82 = vsel %vm53, %v22, 0
  %v85 = vsel %vm53, %v23, 0
  %v88 = vsel %vm53, %v24, 0
  %v91 = vsel %vm53, %v25, 0
  %v94 = vsel %vm53, %v26, 0
  %v97 = vsel %vm53, %v27, 0
  %v100 = vsel %vm53, %v28, 0
  %v103 = vsel %vm53, %v29, 0
  %v106 = vsel %vm53, %v30, 0
  %v109 = vsel %vm53, %v31, 0
  %v112 = vsel %vm53, %v32, 0
  %v115 = vsel %vm53, %v33, 0
  %v118 = vsel %vm53, %v34, 0
  %v121 = vsel %vm53, %v35, 0
  %v124 = vsel %vm53, %v36, 0
  %v127 = vsel %vm53, %v37, 0
  %v130 = vsel %vm53, %v38, 0
  %v133 = vsel %vm53, %v39, 0
  %v136 = vsel %vm53, %v40, 0
  %v139 = vsel %vm53, %v41, 0
  %v142 = vsel %vm53, %v42, 0
  %v145 = vsel %vm53, %v43, 0
  %v148 = vsel %vm53, %v44, 0
  %150 = vmatprep.subr.mxu0 0.0
  %151 = vmatpush1.msra.mxu0 0.0
  %152 = vmatprep.subr.mxu0 0.0
  %153 = vmatpush1.msra.mxu0 0.0
  %154 = vmatprep.subr.mxu0 0.0
  %155 = vmatpush1.msra.mxu0 0.0
  %156 = vmatprep.subr.mxu0 0.0
  %157 = vmatpush1.msra.mxu0 0.0
  %158 = vmatprep.subr.mxu0 0.0
  %159 = vmatpush1.msra.mxu0 0.0
  %160 = vmatprep.subr.mxu0 0.0
  %161 = vmatpush1.msra.mxu0 0.0
  %162 = vmatprep.subr.mxu0 0.0
  %163 = vmatpush1.msra.mxu0 0.0
  %164 = vmatprep.subr.mxu0 0.0
  %165 = vmatpush1.msra.mxu0 0.0
  %166 = vmatprep.subr.mxu0 0.0
  %167 = vmatpush1.msra.mxu0 %v52
  %168 = vmatprep.subr.mxu0 0.0
  %169 = vmatpush1.msra.mxu0 %v51
  %170 = vmatprep.subr.mxu0 0.0
  %171 = vmatpush1.msra.mxu0 %v50
  %172 = vmatprep.subr.mxu0 0.0
  %173 = vmatpush1.msra.mxu0 %v49
  %174 = vmatprep.subr.mxu0 0.0
  %175 = vmatpush1.msra.mxu0 %v48
  %176 = vmatprep.subr.mxu0 0.0
  %177 = vmatpush1.msra.mxu0 %v47
  %178 = vmatprep.subr.mxu0 0.0
  %179 = vmatpush1.msra.mxu0 %v46
  %180 = vmatprep.subr.mxu0 0.0
  %181 = vmatpush1.msra.mxu0 %v45
  %182 = vmatprep.subr.mxu0 0.0
  %183 = vmatpush2.msra.mxu0 0.0
  %184 = vmatprep.subr.mxu0 0.0
  %185 = vmatpush2.msra.mxu0 0.0
  %186 = vmatprep.subr.mxu0 0.0
  %187 = vmatpush2.msra.mxu0 0.0
  %188 = vmatprep.subr.mxu0 0.0
  %189 = vmatpush2.msra.mxu0 0.0
  %190 = vmatprep.subr.mxu0 0.0
  %191 = vmatpush2.msra.mxu0 0.0
  %192 = vmatprep.subr.mxu0 0.0
  %193 = vmatpush2.msra.mxu0 0.0
  %194 = vmatprep.subr.mxu0 0.0
  %195 = vmatpush2.msra.mxu0 0.0
  %196 = vmatprep.subr.mxu0 0.0
  %197 = vmatpush2.msra.mxu0 0.0
  %198 = vmatprep.subr.mxu0 0.0
  %199 = vmatpush2.msra.mxu0 0.0
  %200 = vmatprep.subr.mxu0 0.0
  %201 = vmatpush2.msra.mxu0 0.0
  %202 = vmatprep.subr.mxu0 0.0
  %203 = vmatpush2.msra.mxu0 0.0
  %204 = vmatprep.subr.mxu0 0.0
  %205 = vmatpush2.msra.mxu0 0.0
  %206 = vmatprep.subr.mxu0 0.0
  %207 = vmatpush2.msra.mxu0 0.0
  %208 = vmatprep.subr.mxu0 0.0
  %209 = vmatpush2.msra.mxu0 0.0
  %210 = vmatprep.subr.mxu0 0.0
  %211 = vmatpush2.msra.mxu0 0.0
  %212 = vmatprep.subr.mxu0 0.0
  %213 = vmatpush2.msra.mxu0 0.0
  %214 = vmatprep.mubr.f32.mxu0 0.0
  %215 = vmatmul.mubr.f32.gmra.mxu0 %v55
  %v216 = vpop.f32.mrf.mxu0
  %v217 = vadd.f32 0.0, %v216
  %v218 = vpop.f32.mrf.mxu0
  %219 = vmatprep.mubr.f32.mxu0 0.0
  %220 = vmatmul.mubr.f32.gmra.mxu0 %v58
  %v221 = vpop.f32.mrf.mxu0
  %v222 = vadd.f32 0.0, %v221
  %v223 = vpop.f32.mrf.mxu0
  %224 = vmatprep.mubr.f32.mxu0 0.0
  %225 = vmatmul.mubr.f32.gmra.mxu0 %v61
  %v226 = vpop.f32.mrf.mxu0
  %v227 = vadd.f32 0.0, %v226
  %v228 = vpop.f32.mrf.mxu0
  %229 = vmatprep.mubr.f32.mxu0 0.0
  %230 = vmatmul.mubr.f32.gmra.mxu0 %v64
  %v231 = vpop.f32.mrf.mxu0
  %v232 = vadd.f32 0.0, %v231
  %v233 = vpop.f32.mrf.mxu0
  %234 = vmatprep.mubr.f32.mxu0 0.0
  %235 = vmatmul.mubr.f32.gmra.mxu0 %v67
  %v236 = vpop.f32.mrf.mxu0
  %v237 = vadd.f32 0.0, %v236
  %v238 = vpop.f32.mrf.mxu0
  %239 = vmatprep.mubr.f32.mxu0 0.0
  %240 = vmatmul.mubr.f32.gmra.mxu0 %v70
  %v241 = vpop.f32.mrf.mxu0
  %v242 = vadd.f32 0.0, %v241
  %v243 = vpop.f32.mrf.mxu0
  %244 = vmatprep.mubr.f32.mxu0 0.0
  %245 = vmatmul.mubr.f32.gmra.mxu0 %v73
  %v246 = vpop.f32.mrf.mxu0
  %v247 = vadd.f32 0.0, %v246
  %v248 = vpop.f32.mrf.mxu0
  %249 = vmatprep.mubr.f32.mxu0 0.0
  %250 = vmatmul.mubr.f32.gmra.mxu0 %v76
  %v251 = vpop.f32.mrf.mxu0
  %v252 = vadd.f32 0.0, %v251
  %v253 = vpop.f32.mrf.mxu0
  %254 = vmatprep.mubr.f32.mxu0 0.0
  %255 = vmatmul.mubr.f32.gmra.mxu0 %v79
  %v256 = vpop.f32.mrf.mxu0
  %v257 = vadd.f32 0.0, %v256
  %v258 = vpop.f32.mrf.mxu0
  %259 = vmatprep.mubr.f32.mxu0 0.0
  %260 = vmatmul.mubr.f32.gmra.mxu0 %v82
  %v261 = vpop.f32.mrf.mxu0
  %v262 = vadd.f32 0.0, %v261
  %v263 = vpop.f32.mrf.mxu0
  %264 = vmatprep.mubr.f32.mxu0 0.0
  %265 = vmatmul.mubr.f32.gmra.mxu0 %v85
  %v266 = vpop.f32.mrf.mxu0
  %v267 = vadd.f32 0.0, %v266
  %v268 = vpop.f32.mrf.mxu0
  %269 = vmatprep.mubr.f32.mxu0 0.0
  %270 = vmatmul.mubr.f32.gmra.mxu0 %v88
  %v271 = vpop.f32.mrf.mxu0
  %v272 = vadd.f32 0.0, %v271
  %v273 = vpop.f32.mrf.mxu0
  %274 = vmatprep.mubr.f32.mxu0 0.0
  %275 = vmatmul.mubr.f32.gmra.mxu0 %v91
  %v276 = vpop.f32.mrf.mxu0
  %v277 = vadd.f32 0.0, %v276
  %v278 = vpop.f32.mrf.mxu0
  %279 = vmatprep.mubr.f32.mxu0 0.0
  %280 = vmatmul.mubr.f32.gmra.mxu0 %v94
  %v281 = vpop.f32.mrf.mxu0
  %v282 = vadd.f32 0.0, %v281
  %v283 = vpop.f32.mrf.mxu0
  %284 = vmatprep.mubr.f32.mxu0 0.0
  %285 = vmatmul.mubr.f32.gmra.mxu0 %v97
  %v286 = vpop.f32.mrf.mxu0
  %v287 = vadd.f32 0.0, %v286
  %v288 = vpop.f32.mrf.mxu0
  %289 = vmatprep.mubr.f32.mxu0 0.0
  %290 = vmatmul.mubr.f32.gmra.mxu0 %v100
  %v291 = vpop.f32.mrf.mxu0
  %v292 = vadd.f32 0.0, %v291
  %v293 = vpop.f32.mrf.mxu0
  %294 = vmatprep.mubr.f32.mxu0 0.0
  %295 = vmatmul.mubr.f32.gmra.mxu0 %v103
  %v296 = vpop.f32.mrf.mxu0
  %v297 = vadd.f32 0.0, %v296
  %v298 = vpop.f32.mrf.mxu0
  %299 = vmatprep.mubr.f32.mxu0 0.0
  %300 = vmatmul.mubr.f32.gmra.mxu0 %v106
  %v301 = vpop.f32.mrf.mxu0
  %v302 = vadd.f32 0.0, %v301
  %v303 = vpop.f32.mrf.mxu0
  %304 = vmatprep.mubr.f32.mxu0 0.0
  %305 = vmatmul.mubr.f32.gmra.mxu0 %v109
  %v306 = vpop.f32.mrf.mxu0
  %v307 = vadd.f32 0.0, %v306
  %v308 = vpop.f32.mrf.mxu0
  %309 = vmatprep.mubr.f32.mxu0 0.0
  %310 = vmatmul.mubr.f32.gmra.mxu0 %v112
  %v311 = vpop.f32.mrf.mxu0
  %v312 = vadd.f32 0.0, %v311
  %v313 = vpop.f32.mrf.mxu0
  %314 = vmatprep.mubr.f32.mxu0 0.0
  %315 = vmatmul.mubr.f32.gmra.mxu0 %v115
  %v316 = vpop.f32.mrf.mxu0
  %v317 = vadd.f32 0.0, %v316
  %v318 = vpop.f32.mrf.mxu0
  %319 = vmatprep.mubr.f32.mxu0 0.0
  %320 = vmatmul.mubr.f32.gmra.mxu0 %v118
  %v321 = vpop.f32.mrf.mxu0
  %v322 = vadd.f32 0.0, %v321
  %v323 = vpop.f32.mrf.mxu0
  %324 = vmatprep.mubr.f32.mxu0 0.0
  %325 = vmatmul.mubr.f32.gmra.mxu0 %v121
  %v326 = vpop.f32.mrf.mxu0
  %v327 = vadd.f32 0.0, %v326
  %v328 = vpop.f32.mrf.mxu0
  %329 = vmatprep.mubr.f32.mxu0 0.0
  %330 = vmatmul.mubr.f32.gmra.mxu0 %v124
  %v331 = vpop.f32.mrf.mxu0
  %v332 = vadd.f32 0.0, %v331
  %v333 = vpop.f32.mrf.mxu0
  %334 = vmatprep.mubr.f32.mxu0 0.0
  %335 = vmatmul.mubr.f32.gmra.mxu0 %v127
  %v336 = vpop.f32.mrf.mxu0
  %v337 = vadd.f32 0.0, %v336
  %v338 = vpop.f32.mrf.mxu0
  %339 = vmatprep.mubr.f32.mxu0 0.0
  %340 = vmatmul.mubr.f32.gmra.mxu0 %v130
  %v341 = vpop.f32.mrf.mxu0
  %v342 = vadd.f32 0.0, %v341
  %v343 = vpop.f32.mrf.mxu0
  %344 = vmatprep.mubr.f32.mxu0 0.0
  %345 = vmatmul.mubr.f32.gmra.mxu0 %v133
  %v346 = vpop.f32.mrf.mxu0
  %v347 = vadd.f32 0.0, %v346
  %v348 = vpop.f32.mrf.mxu0
  %349 = vmatprep.mubr.f32.mxu0 0.0
  %350 = vmatmul.mubr.f32.gmra.mxu0 %v136
  %v351 = vpop.f32.mrf.mxu0
  %v352 = vadd.f32 0.0, %v351
  %v353 = vpop.f32.mrf.mxu0
  %354 = vmatprep.mubr.f32.mxu0 0.0
  %355 = vmatmul.mubr.f32.gmra.mxu0 %v139
  %v356 = vpop.f32.mrf.mxu0
  %v357 = vadd.f32 0.0, %v356
  %v358 = vpop.f32.mrf.mxu0
  %359 = vmatprep.mubr.f32.mxu0 0.0
  %360 = vmatmul.mubr.f32.gmra.mxu0 %v142
  %v361 = vpop.f32.mrf.mxu0
  %v362 = vadd.f32 0.0, %v361
  %v363 = vpop.f32.mrf.mxu0
  %364 = vmatprep.mubr.f32.mxu0 0.0
  %365 = vmatmul.mubr.f32.gmra.mxu0 %v145
  %v366 = vpop.f32.mrf.mxu0
  %v367 = vadd.f32 0.0, %v366
  %v368 = vpop.f32.mrf.mxu0
  %369 = vmatprep.mubr.f32.mxu0 0.0
  %370 = vmatmul.mubr.f32.gmra.mxu0 %v148
  %v371 = vpop.f32.mrf.mxu0
  %v372 = vadd.f32 0.0, %v371
  %v373 = vpop.f32.mrf.mxu0
  %374 = vdwg.mxu0
  %v375 = vpack.c.bf16 %v222, %v217
  %v376 = vpack.c.bf16 %v232, %v227
  %v377 = vpack.c.bf16 %v242, %v237
  %v378 = vpack.c.bf16 %v252, %v247
  %v379 = vpack.c.bf16 %v262, %v257
  %v380 = vpack.c.bf16 %v272, %v267
  %v381 = vpack.c.bf16 %v282, %v277
  %v382 = vpack.c.bf16 %v292, %v287
  %v383 = vpack.c.bf16 %v302, %v297
  %v384 = vpack.c.bf16 %v312, %v307
  %v385 = vpack.c.bf16 %v322, %v317
  %v386 = vpack.c.bf16 %v332, %v327
  %v387 = vpack.c.bf16 %v342, %v337
  %v388 = vpack.c.bf16 %v352, %v347
  %v389 = vpack.c.bf16 %v362, %v357
  %v390 = vpack.c.bf16 %v372, %v367
  %v407 = vunpack.c.l.b16 %v375
  %v408 = vunpack.c.h.b16 %v375
  %v409 = vunpack.c.l.b16 %v376
  %v410 = vunpack.c.h.b16 %v376
  %v411 = vunpack.c.l.b16 %v377
  %v412 = vunpack.c.h.b16 %v377
  %v413 = vunpack.c.l.b16 %v378
  %v414 = vunpack.c.h.b16 %v378
  %v415 = vunpack.c.l.b16 %v379
  %v416 = vunpack.c.h.b16 %v379
  %v417 = vunpack.c.l.b16 %v380
  %v418 = vunpack.c.h.b16 %v380
  %v419 = vunpack.c.l.b16 %v381
  %v420 = vunpack.c.h.b16 %v381
  %v421 = vunpack.c.l.b16 %v382
  %v422 = vunpack.c.h.b16 %v382
  %v423 = vunpack.c.l.b16 %v383
  %v424 = vunpack.c.h.b16 %v383
  %v425 = vunpack.c.l.b16 %v384
  %v426 = vunpack.c.h.b16 %v384
  %v427 = vunpack.c.l.b16 %v385
  %v428 = vunpack.c.h.b16 %v385
  %v429 = vunpack.c.l.b16 %v386
  %v430 = vunpack.c.h.b16 %v386
  %v431 = vunpack.c.l.b16 %v387
  %v432 = vunpack.c.h.b16 %v387
  %v433 = vunpack.c.l.b16 %v388
  %v434 = vunpack.c.h.b16 %v388
  %v435 = vunpack.c.l.b16 %v389
  %v436 = vunpack.c.h.b16 %v389
  %v437 = vunpack.c.l.b16 %v390
  %v438 = vunpack.c.h.b16 %v390
  %v439 = vpack.c.b16 %v407, %v407
  %v440 = vpack.c.b16 %v408, %v408
  %v441 = vpack.c.b16 %v409, %v409
  %v442 = vpack.c.b16 %v410, %v410
  %v443 = vpack.c.b16 %v411, %v411
  %v444 = vpack.c.b16 %v412, %v412
  %v445 = vpack.c.b16 %v413, %v413
  %v446 = vpack.c.b16 %v414, %v414
  %v447 = vpack.c.b16 %v415, %v415
  %v448 = vpack.c.b16 %v416, %v416
  %v449 = vpack.c.b16 %v417, %v417
  %v450 = vpack.c.b16 %v418, %v418
  %v451 = vpack.c.b16 %v419, %v419
  %v452 = vpack.c.b16 %v420, %v420
  %v453 = vpack.c.b16 %v421, %v421
  %v454 = vpack.c.b16 %v422, %v422
  %v455 = vpack.c.b16 %v423, %v423
  %v456 = vpack.c.b16 %v424, %v424
  %v457 = vpack.c.b16 %v425, %v425
  %v458 = vpack.c.b16 %v426, %v426
  %v459 = vpack.c.b16 %v427, %v427
  %v460 = vpack.c.b16 %v428, %v428
  %v461 = vpack.c.b16 %v429, %v429
  %v462 = vpack.c.b16 %v430, %v430
  %v463 = vpack.c.b16 %v431, %v431
  %v464 = vpack.c.b16 %v432, %v432
  %v465 = vpack.c.b16 %v433, %v433
  %v466 = vpack.c.b16 %v434, %v434
  %v467 = vpack.c.b16 %v435, %v435
  %v468 = vpack.c.b16 %v436, %v436
  %v469 = vpack.c.b16 %v437, %v437
  %v470 = vpack.c.b16 %v438, %v438
  %vm503 = vcmask 519168
  %504 = vst.msk [vmem:[%s2] sm:$0xf] %vm503, %v439
  %505 = vst.msk [vmem:[%s2 + $0x4] sm:$0xf] %vm503, %v440
  %506 = vst.msk [vmem:[%s2 + $0x8] sm:$0xf] %vm503, %v441
  %507 = vst.msk [vmem:[%s2 + $0xc] sm:$0xf] %vm503, %v442
  %508 = vst.msk [vmem:[%s2 + $0x10] sm:$0xf] %vm503, %v443
  %509 = vst.msk [vmem:[%s2 + $0x14] sm:$0xf] %vm503, %v444
  %510 = vst.msk [vmem:[%s2 + $0x18] sm:$0xf] %vm503, %v445
  %511 = vst.msk [vmem:[%s2 + $0x1c] sm:$0xf] %vm503, %v446
  %512 = vst.msk [vmem:[%s2 + $0x20] sm:$0xf] %vm503, %v447
  %513 = vst.msk [vmem:[%s2 + $0x24] sm:$0xf] %vm503, %v448
  %514 = vst.msk [vmem:[%s2 + $0x28] sm:$0xf] %vm503, %v449
  %515 = vst.msk [vmem:[%s2 + $0x2c] sm:$0xf] %vm503, %v450
  %516 = vst.msk [vmem:[%s2 + $0x30] sm:$0xf] %vm503, %v451
  %517 = vst.msk [vmem:[%s2 + $0x34] sm:$0xf] %vm503, %v452
  %518 = vst.msk [vmem:[%s2 + $0x38] sm:$0xf] %vm503, %v453
  %519 = vst.msk [vmem:[%s2 + $0x3c] sm:$0xf] %vm503, %v454
  %520 = vst.msk [vmem:[%s2 + $0x40] sm:$0xf] %vm503, %v455
  %521 = vst.msk [vmem:[%s2 + $0x44] sm:$0xf] %vm503, %v456
  %522 = vst.msk [vmem:[%s2 + $0x48] sm:$0xf] %vm503, %v457
  %523 = vst.msk [vmem:[%s2 + $0x4c] sm:$0xf] %vm503, %v458
  %524 = vst.msk [vmem:[%s2 + $0x50] sm:$0xf] %vm503, %v459
  %525 = vst.msk [vmem:[%s2 + $0x54] sm:$0xf] %vm503, %v460
  %526 = vst.msk [vmem:[%s2 + $0x58] sm:$0xf] %vm503, %v461
  %527 = vst.msk [vmem:[%s2 + $0x5c] sm:$0xf] %vm503, %v462
  %528 = vst.msk [vmem:[%s2 + $0x60] sm:$0xf] %vm503, %v463
  %529 = vst.msk [vmem:[%s2 + $0x64] sm:$0xf] %vm503, %v464
  %530 = vst.msk [vmem:[%s2 + $0x68] sm:$0xf] %vm503, %v465
  %531 = vst.msk [vmem:[%s2 + $0x6c] sm:$0xf] %vm503, %v466
  %532 = vst.msk [vmem:[%s2 + $0x70] sm:$0xf] %vm503, %v467
  %533 = vst.msk [vmem:[%s2 + $0x74] sm:$0xf] %vm503, %v468
  %534 = vst.msk [vmem:[%s2 + $0x78] sm:$0xf] %vm503, %v469
  %535 = vst.msk [vmem:[%s2 + $0x7c] sm:$0xf] %vm503, %v470
  %568 = vrot.lane.b32.xlu0 %v217, 64
  %v569 = vpop.permute.xlu0 %568
  %570 = vrot.lane.b32.xlu0 %v222, 64
  %v571 = vpop.permute.xlu0 %570
  %572 = vrot.lane.b32.xlu0 %v227, 64
  %v573 = vpop.permute.xlu0 %572
  %574 = vrot.lane.b32.xlu0 %v232, 64
  %v575 = vpop.permute.xlu0 %574
  %576 = vrot.lane.b32.xlu0 %v237, 64
  %v577 = vpop.permute.xlu0 %576
  %578 = vrot.lane.b32.xlu0 %v242, 64
  %v579 = vpop.permute.xlu0 %578
  %580 = vrot.lane.b32.xlu0 %v247, 64
  %v581 = vpop.permute.xlu0 %580
  %582 = vrot.lane.b32.xlu0 %v252, 64
  %v583 = vpop.permute.xlu0 %582
  %584 = vrot.lane.b32.xlu0 %v257, 64
  %v585 = vpop.permute.xlu0 %584
  %586 = vrot.lane.b32.xlu0 %v262, 64
  %v587 = vpop.permute.xlu0 %586
  %588 = vrot.lane.b32.xlu0 %v267, 64
  %v589 = vpop.permute.xlu0 %588
  %590 = vrot.lane.b32.xlu0 %v272, 64
  %v591 = vpop.permute.xlu0 %590
  %592 = vrot.lane.b32.xlu0 %v277, 64
  %v593 = vpop.permute.xlu0 %592
  %594 = vrot.lane.b32.xlu0 %v282, 64
  %v595 = vpop.permute.xlu0 %594
  %596 = vrot.lane.b32.xlu0 %v287, 64
  %v597 = vpop.permute.xlu0 %596
  %598 = vrot.lane.b32.xlu0 %v292, 64
  %v599 = vpop.permute.xlu0 %598
  %600 = vrot.lane.b32.xlu0 %v297, 64
  %v601 = vpop.permute.xlu0 %600
  %602 = vrot.lane.b32.xlu0 %v302, 64
  %v603 = vpop.permute.xlu0 %602
  %604 = vrot.lane.b32.xlu0 %v307, 64
  %v605 = vpop.permute.xlu0 %604
  %606 = vrot.lane.b32.xlu0 %v312, 64
  %v607 = vpop.permute.xlu0 %606
  %608 = vrot.lane.b32.xlu0 %v317, 64
  %v609 = vpop.permute.xlu0 %608
  %610 = vrot.lane.b32.xlu0 %v322, 64
  %v611 = vpop.permute.xlu0 %610
  %612 = vrot.lane.b32.xlu0 %v327, 64
  %v613 = vpop.permute.xlu0 %612
  %614 = vrot.lane.b32.xlu0 %v332, 64
  %v615 = vpop.permute.xlu0 %614
  %616 = vrot.lane.b32.xlu0 %v337, 64
  %v617 = vpop.permute.xlu0 %616
  %618 = vrot.lane.b32.xlu0 %v342, 64
  %v619 = vpop.permute.xlu0 %618
  %620 = vrot.lane.b32.xlu0 %v347, 64
  %v621 = vpop.permute.xlu0 %620
  %622 = vrot.lane.b32.xlu0 %v352, 64
  %v623 = vpop.permute.xlu0 %622
  %624 = vrot.lane.b32.xlu0 %v357, 64
  %v625 = vpop.permute.xlu0 %624
  %626 = vrot.lane.b32.xlu0 %v362, 64
  %v627 = vpop.permute.xlu0 %626
  %628 = vrot.lane.b32.xlu0 %v367, 64
  %v629 = vpop.permute.xlu0 %628
  %630 = vrot.lane.b32.xlu0 %v372, 64
  %v631 = vpop.permute.xlu0 %630
  %vm664 = vcmask 31744
  %665 = vst.msk [vmem:[%s3] sm:$0xff] %vm664, %v569
  %666 = vst.msk [vmem:[%s3 + $0x8] sm:$0xff] %vm664, %v571
  %667 = vst.msk [vmem:[%s3 + $0x10] sm:$0xff] %vm664, %v573
  %668 = vst.msk [vmem:[%s3 + $0x18] sm:$0xff] %vm664, %v575
  %669 = vst.msk [vmem:[%s3 + $0x20] sm:$0xff] %vm664, %v577
  %670 = vst.msk [vmem:[%s3 + $0x28] sm:$0xff] %vm664, %v579
  %671 = vst.msk [vmem:[%s3 + $0x30] sm:$0xff] %vm664, %v581
  %672 = vst.msk [vmem:[%s3 + $0x38] sm:$0xff] %vm664, %v583
  %673 = vst.msk [vmem:[%s3 + $0x40] sm:$0xff] %vm664, %v585
  %674 = vst.msk [vmem:[%s3 + $0x48] sm:$0xff] %vm664, %v587
  %675 = vst.msk [vmem:[%s3 + $0x50] sm:$0xff] %vm664, %v589
  %676 = vst.msk [vmem:[%s3 + $0x58] sm:$0xff] %vm664, %v591
  %677 = vst.msk [vmem:[%s3 + $0x60] sm:$0xff] %vm664, %v593
  %678 = vst.msk [vmem:[%s3 + $0x68] sm:$0xff] %vm664, %v595
  %679 = vst.msk [vmem:[%s3 + $0x70] sm:$0xff] %vm664, %v597
  %680 = vst.msk [vmem:[%s3 + $0x78] sm:$0xff] %vm664, %v599
  %681 = vst.msk [vmem:[%s3 + $0x80] sm:$0xff] %vm664, %v601
  %682 = vst.msk [vmem:[%s3 + $0x88] sm:$0xff] %vm664, %v603
  %683 = vst.msk [vmem:[%s3 + $0x90] sm:$0xff] %vm664, %v605
  %684 = vst.msk [vmem:[%s3 + $0x98] sm:$0xff] %vm664, %v607
  %685 = vst.msk [vmem:[%s3 + $0xa0] sm:$0xff] %vm664, %v609
  %686 = vst.msk [vmem:[%s3 + $0xa8] sm:$0xff] %vm664, %v611
  %687 = vst.msk [vmem:[%s3 + $0xb0] sm:$0xff] %vm664, %v613
  %688 = vst.msk [vmem:[%s3 + $0xb8] sm:$0xff] %vm664, %v615
  %689 = vst.msk [vmem:[%s3 + $0xc0] sm:$0xff] %vm664, %v617
  %690 = vst.msk [vmem:[%s3 + $0xc8] sm:$0xff] %vm664, %v619
  %691 = vst.msk [vmem:[%s3 + $0xd0] sm:$0xff] %vm664, %v621
  %692 = vst.msk [vmem:[%s3 + $0xd8] sm:$0xff] %vm664, %v623
  %693 = vst.msk [vmem:[%s3 + $0xe0] sm:$0xff] %vm664, %v625
  %694 = vst.msk [vmem:[%s3 + $0xe8] sm:$0xff] %vm664, %v627
  %695 = vst.msk [vmem:[%s3 + $0xf0] sm:$0xff] %vm664, %v629
  %696 = vst.msk [vmem:[%s3 + $0xf8] sm:$0xff] %vm664, %v631
  // Predicated region
  $region10: #{tpu_custom_call.1} parent=0 // pred_check
    _
  $region11: #{tpu_custom_call.1} parent=0 // pred_check_branch
    %698 = sbr.rel (0) target = $region13
  $region12: #{tpu_custom_call.1} parent=0 // pred_region
    _
  $region13: #{tpu_custom_call.1} parent=0 // pred_fallthru
    _
  // Predicated region
  $region14: #{tpu_custom_call.1} parent=0 // pred_check
    _
  $region15: #{tpu_custom_call.1} parent=0 // pred_check_branch
    %700 = sbr.rel (0) target = $region17
  $region16: #{tpu_custom_call.1} parent=0 // pred_region
    _
  $region17: #{tpu_custom_call.1} parent=0 // pred_fallthru
    _
  // Predicated region
  $region18: #{tpu_custom_call.1} parent=0 // pred_check
    _
  $region19: #{tpu_custom_call.1} parent=0 // pred_check_branch
    %702 = sbr.rel (0) target = $region21
  $region20: #{tpu_custom_call.1} parent=0 // pred_region
    _
  $region21: #{tpu_custom_call.1} parent=0 // pred_fallthru
    _
  // Predicated region
  $region22: #{tpu_custom_call.1} parent=0 // pred_check
    _
  $region23: #{tpu_custom_call.1} parent=0 // pred_check_branch
    %704 = sbr.rel (0) target = $region25
  $region24: #{tpu_custom_call.1} parent=0 // pred_region
    _
  $region25: #{tpu_custom_call.1} parent=0 // pred_fallthru
    _

</llo_original>
